<compile_context>
chip_gen: v7x
topology: tpu7x:2x2x1
jax: 0.10.0
libtpu: 0.0.40
codegen_flags: <defaults>
</compile_context>

<pallas_src>
import functools

import jax
import jax.numpy as jnp
from jax.experimental import pallas as pl
from jax.experimental.pallas import tpu as pltpu


def _logit_kernel(x_ref, w_ref, b_ref, o_ref):
    """One batch tile.

    x_ref: (TB, D) f32 VMEM  -- activation tile (batch -> sublanes, features -> lanes)
    w_ref: (1, D)  f32 VMEM  -- Linear weight, resident across the whole grid
    b_ref: (1, 1)  f32 SMEM  -- Linear bias (scalar path, no vreg/DMA cost)
    o_ref: (1, TB) f32 VMEM  -- lane-dense output block (batch on lanes)
    """
    # (1, D) . (TB, D)^T -> (1, TB): contraction over the feature axis, so the
    # result (and hence the store) is lane-dense.
    z = jax.lax.dot_general(
        w_ref[...],
        x_ref[...],
        dimension_numbers=(((1,), (1,)), ((), ())),
        preferred_element_type=jnp.float32,
    )
    z = z + b_ref[0, 0]
    # Literal 1/(1+exp(z)) to keep the module's exact semantics (incl. overflow -> 0).
    o_ref[...] = (1.0 / (1.0 + jnp.exp(z))).astype(o_ref.dtype)


def _pick_tile_b(batch, d, *, itemsize=4, vmem_budget_bytes=20 << 20, max_tile=2048):
    """Largest batch tile whose double-buffered x block fits a safe VMEM budget."""
    max_rows = max(1, vmem_budget_bytes // (2 * d * itemsize))
    tile = min(batch, max_tile, max_rows)
    if tile >= batch:
        return batch  # single block covering the whole (small) batch
    # Multi-block case: lane-dense (1, tile) output block needs tile % 128 == 0,
    # which also satisfies the sublane-of-8 rule for the (tile, D) x block.
    return max(128, (tile // 128) * 128)


@functools.partial(jax.jit, static_argnames=("tile_b",))
def model_logit_forward(x, w, b, *, tile_b=None):
    """Pallas implementation of ModelLogit.forward.

    x: (B, D) float32
    w: (1, D) float32  -- torch.nn.Linear weight layout (out_features, in_features)
    b: (1,)   float32
    returns (B, 1) float32
    """
    B, D = x.shape
    if tile_b is None:
        tile_b = _pick_tile_b(B, D)
    grid = (pl.cdiv(B, tile_b),)

    b2 = b.reshape(1, 1).astype(jnp.float32)

    out_flat = pl.pallas_call(
        _logit_kernel,
        out_shape=jax.ShapeDtypeStruct((1, B), x.dtype),
        grid_spec=pltpu.PrefetchScalarGridSpec(
            num_scalar_prefetch=0,
            grid=grid,
            in_specs=[
                pl.BlockSpec((tile_b, D), lambda i: (i, 0)),          # x tile
                pl.BlockSpec((1, D), lambda i: (0, 0)),               # weight (resident)
                pl.BlockSpec(memory_space=pltpu.MemorySpace.SMEM),    # bias scalar
            ],
            out_specs=pl.BlockSpec((1, tile_b), lambda i: (0, i)),    # lane-dense out
        ),
        compiler_params=pltpu.CompilerParams(
            dimension_semantics=("parallel",),   # shards tiles across TCs on v7x
            vmem_limit_bytes=48 << 20,           # < 64 MiB physical on v7x, raises v5e/v6e scope
        ),
        cost_estimate=pl.CostEstimate(
            flops=2 * B * D,
            transcendentals=B,
            bytes_accessed=(B * D + D + 1 + B) * 4,
        ),
    )(x, w, b2)

    # Layout plumbing only: (1, B) lane-dense slab -> (B, 1) module output.
    return out_flat.reshape(B, 1)


if __name__ == "__main__":
    key = jax.random.PRNGKey(0)

    def init_linear(k, d):
        # Mimic torch.nn.Linear default init: U(-1/sqrt(D), 1/sqrt(D)).
        kw, kb = jax.random.split(k)
        bound = 1.0 / jnp.sqrt(jnp.float32(d))
        w = jax.random.uniform(kw, (1, d), minval=-bound, maxval=bound, dtype=jnp.float32)
        b = jax.random.uniform(kb, (1,), minval=-bound, maxval=bound, dtype=jnp.float32)
        return w, b

    def reference(x, w, b):
        z = jnp.dot(x, w.T, precision=jax.lax.Precision.HIGHEST) + b
        return 1.0 / (1.0 + jnp.exp(z))

    # Test 1: toy shape consistent with the module (batch=8, input_dim=32) -> grid=(1,).
    k1, k2, key = jax.random.split(key, 3)
    B, D = 8, 32
    x = jax.random.normal(k1, (B, D), dtype=jnp.float32)
    w, b = init_linear(k2, D)
    out = jax.block_until_ready(model_logit_forward(x, w, b))
    assert out.shape == (B, 1)
    # Tolerance allows for MXU f32 accumulation-pass differences vs the XLA reference.
    assert jnp.allclose(out, reference(x, w, b), atol=5e-4, rtol=5e-4)

    # Test 2: multi-block grid (4 tiles of 128 rows) exercising lane-dense tiled stores.
    k1, k2, key = jax.random.split(key, 3)
    B, D = 512, 32
    x = jax.random.normal(k1, (B, D), dtype=jnp.float32)
    w, b = init_linear(k2, D)
    out = jax.block_until_ready(model_logit_forward(x, w, b, tile_b=128))
    assert out.shape == (B, 1)
    assert jnp.allclose(out, reference(x, w, b), atol=5e-4, rtol=5e-4)

    print("KERNEL_OK")
</pallas_src>

<mosaic_0001>
module attributes {stable_mosaic.version = 11 : i64} {
  func.func @_logit_kernel(%arg0: i32, %arg1: memref<8x32xf32, #tpu.memory_space<vmem>>, %arg2: memref<1x32xf32, #tpu.memory_space<vmem>>, %arg3: memref<1x1xf32, #tpu.memory_space<smem>>, %arg4: memref<1x8xf32, #tpu.memory_space<vmem>>) attributes {dimension_semantics = [#tpu.dimension_semantics<parallel>], iteration_bounds = array<i64: 1>, scalar_prefetch = 0 : i64, scratch_operands = 0 : i64, tpu.core_type = #tpu.core_type<tc>, window_params = [{transform_indices = @transform_0, window_bounds = array<i64: 8, 32>}, {pipeline_mode = #tpu.pipeline_mode<synchronous>, transform_indices = @transform_1, window_bounds = array<i64: 1, 32>}, {transform_indices = @transform_2, window_bounds = array<i64: 1, 1>}, {transform_indices = @transform_3, window_bounds = array<i64: 1, 8>}]} {
    %c0 = arith.constant 0 : index
    %c0_0 = arith.constant 0 : index
    %0 = vector.load %arg2[%c0, %c0_0] : memref<1x32xf32, #tpu.memory_space<vmem>>, vector<1x32xf32>
    %c0_1 = arith.constant 0 : index
    %c0_2 = arith.constant 0 : index
    %1 = vector.load %arg1[%c0_1, %c0_2] : memref<8x32xf32, #tpu.memory_space<vmem>>, vector<8x32xf32>
    %cst = arith.constant dense<0.000000e+00> : vector<1x8xf32>
    %2 = tpu.matmul %0, %1, %cst {dimension_numbers = #tpu.dot_dimension_numbers<[1], [1], [0], [0], [0, 0, 1, 0], [], []>} : vector<1x32xf32>, vector<8x32xf32>, vector<1x8xf32> -> vector<1x8xf32>
    %c0_3 = arith.constant 0 : index
    %c0_4 = arith.constant 0 : index
    %3 = memref.load %arg3[%c0_3, %c0_4] : memref<1x1xf32, #tpu.memory_space<smem>>
    %4 = vector.broadcast %3 : f32 to vector<1x8xf32>
    %5 = arith.addf %2, %4 : vector<1x8xf32>
    %6 = math.exp %5 : vector<1x8xf32>
    %cst_5 = arith.constant 1.000000e+00 : f32
    %7 = vector.broadcast %cst_5 : f32 to vector<1x8xf32>
    %8 = arith.addf %7, %6 : vector<1x8xf32>
    %cst_6 = arith.constant 1.000000e+00 : f32
    %9 = vector.broadcast %cst_6 : f32 to vector<1x8xf32>
    %10 = arith.divf %9, %8 : vector<1x8xf32>
    %c0_7 = arith.constant 0 : index
    %c0_8 = arith.constant 0 : index
    %11 = vector.load %arg4[%c0_7, %c0_8] : memref<1x8xf32, #tpu.memory_space<vmem>>, vector<1x8xf32>
    tpu.vector_store %arg4[%c0_7, %c0_8], %10 {strides = array<i32>} : memref<1x8xf32, #tpu.memory_space<vmem>>, vector<1x8xf32>,
    return
  }
  func.func @transform_0(%arg0: i32) -> (i32, i32) {
    %c0_i32 = arith.constant 0 : i32
    %c0_i32_0 = arith.constant 0 : i32
    return %arg0, %c0_i32 : i32, i32
  }
  func.func @transform_1(%arg0: i32) -> (i32, i32) {
    %c0_i32 = arith.constant 0 : i32
    %c0_i32_0 = arith.constant 0 : i32
    %c0_i32_1 = arith.constant 0 : i32
    return %c0_i32, %c0_i32_0 : i32, i32
  }
  func.func @transform_2(%arg0: i32) -> (i32, i32) {
    %c0_i32 = arith.constant 0 : i32
    %c0_i32_0 = arith.constant 0 : i32
    %c0_i32_1 = arith.constant 0 : i32
    return %c0_i32, %c0_i32_0 : i32, i32
  }
  func.func @transform_3(%arg0: i32) -> (i32, i32) {
    %c0_i32 = arith.constant 0 : i32
    %c0_i32_0 = arith.constant 0 : i32
    return %c0_i32, %arg0 : i32, i32
  }
}

</mosaic_0001>

<llo_original>
// kernel: model_logit_forward.1
$region0: #{model_logit_forward.1}
  #allocation0 [shape = 'u32[]', space=smem, size = 0x4, offset = 0x4, fixed_abs, tag = 'smem constant byte address 0x4 - core index']
  #allocation1 [shape = 'u32[144,128]{1,0:T(1,128)}', space=vmem, size = 0x12000, scoped, tag = 'internal scratch']
  #allocation2 [shape = 'f32[1,1]{1,0:T(1,128)S(6)}', space=smem, size = 0x200, scoped, tag = 'scoped memory for model_logit_forward.1']
  %s0 = inlined_call_operand.hbm [shape: f32[8,32], index: 0, kind: input, shape index: {}]
  %s1 = inlined_call_operand.vmem [shape: f32[1,32], index: 1, kind: input, shape index: {}]
  %s2 = inlined_call_operand.<no memory space> [shape: f32[1,1], index: 2, kind: input, shape index: {}]
  %s3 = inlined_call_operand.hbm [shape: f32[1,8], index: 3, kind: output, shape index: {}]
  %s4 = sld [smem:[#allocation0]]
  $region26: #{model_logit_forward.1} parent=0
    _
  %s6 = ssub.s32 1, %s4
  %s7 = scalar_select 0, %s6, %s4
  %8 = sst [smem:[#allocation2]] %s2
  $region1: #{model_logit_forward.1} parent=0
    #allocation3 [shape = 'u8[4096]{0}', space=vmem, size = 0x1000, scoped, tag = 'input window, operand 0, single buffered']
    #allocation4 [shape = 's32[1]{0}', space=sflag, size = 0x4, scoped, tag = 'scoped memory for model_logit_forward.1']
    #allocation5 [shape = 's32[1]{0}', space=sflag, size = 0x4, scoped, tag = 'scoped memory for model_logit_forward.1']
    #allocation6 [shape = 'u8[512]{0}', space=vmem, size = 0x400, scoped, tag = 'output window, operand 0, single buffered']
    %9 = vsyncpa [#allocation4], 0
    %10 = vsyncpa [#allocation5], 0
    // Predicated region
    $region2: #{model_logit_forward.1} parent=1 // pred_check
      _
    $region3: #{model_logit_forward.1} parent=1 // pred_check_branch
      %12 = sbr.rel (0) target = $region5
    $region4: #{model_logit_forward.1} parent=1 // pred_region
      %s14 = ssub.s32 128, 128
      %15 = vsyncadd [#allocation4], %s14
      %s17 = sshll.u32 [#allocation3], 4
      %s18 = int_to_ptr.vmem [resolvable:$true] %s17
      %20 = dma.hbm_to_vmem [thread:$0]  %s0, 128, %s18, [#allocation4]
    $region5: #{model_logit_forward.1} parent=1 // pred_fallthru
      _
    // Predicated region
    $region6: #{model_logit_forward.1} parent=1 // pred_check
      _
    $region7: #{model_logit_forward.1} parent=1 // pred_check_branch
      %22 = sbr.rel (0) target = $region9
    $region8: #{model_logit_forward.1} parent=1 // pred_region
      _
    $region9: #{model_logit_forward.1} parent=1 // pred_fallthru
      _
    // Predicated region
    $region10: #{model_logit_forward.1} parent=1 // pred_check
      _
    $region11: #{model_logit_forward.1} parent=1 // pred_check_branch
      %24 = sbr.rel (0) target = $region13
    $region12: #{model_logit_forward.1} parent=1 // pred_region
      _
    $region13: #{model_logit_forward.1} parent=1 // pred_fallthru
      _
    // Predicated region
    $region14: #{model_logit_forward.1} parent=1 // pred_check
      _
    $region15: #{model_logit_forward.1} parent=1 // pred_check_branch
      %26 = sbr.rel (0) target = $region17
    $region16: #{model_logit_forward.1} parent=1 // pred_region
      %27 = dma.done [#allocation4], 128
    $region17: #{model_logit_forward.1} parent=1 // pred_fallthru
      _
    %v28 = vld [vmem:[%s1] sm:$0x1]
    %v29 = vld [vmem:[#allocation3] sm:$0xff]
    %s30 = sld [smem:[#allocation2]]
    %v31 = vstv %s30
    %vm32 = vcmask 261120
    %v34 = vsel %vm32, %v28, 0
    %v37 = vsel %vm32, %v29, 0
    %39 = vmatprep.subr.mxu0 0.0
    %40 = vmatpush1.xpose.msra.mxu0 %v37
    %41 = vmatprep.subr.mxu0 0.0
    %42 = vmatpush1.xpose.msra.mxu0 0.0
    %43 = vmatprep.subr.mxu0 0.0
    %44 = vmatpush1.xpose.msra.mxu0 0.0
    %45 = vmatprep.subr.mxu0 0.0
    %46 = vmatpush1.xpose.msra.mxu0 0.0
    %47 = vmatprep.subr.mxu0 0.0
    %48 = vmatpush1.xpose.msra.mxu0 0.0
    %49 = vmatprep.subr.mxu0 0.0
    %50 = vmatpush1.xpose.msra.mxu0 0.0
    %51 = vmatprep.subr.mxu0 0.0
    %52 = vmatpush1.xpose.msra.mxu0 0.0
    %53 = vmatprep.subr.mxu0 0.0
    %54 = vmatpush1.xpose.msra.mxu0 0.0
    %55 = vmatprep.subr.mxu0 0.0
    %56 = vmatpush1.xpose.msra.mxu0 0.0
    %57 = vmatprep.subr.mxu0 0.0
    %58 = vmatpush1.xpose.msra.mxu0 0.0
    %59 = vmatprep.subr.mxu0 0.0
    %60 = vmatpush1.xpose.msra.mxu0 0.0
    %61 = vmatprep.subr.mxu0 0.0
    %62 = vmatpush1.xpose.msra.mxu0 0.0
    %63 = vmatprep.subr.mxu0 0.0
    %64 = vmatpush1.xpose.msra.mxu0 0.0
    %65 = vmatprep.subr.mxu0 0.0
    %66 = vmatpush1.xpose.msra.mxu0 0.0
    %67 = vmatprep.subr.mxu0 0.0
    %68 = vmatpush1.xpose.msra.mxu0 0.0
    %69 = vmatprep.subr.mxu0 0.0
    %70 = vmatpush1.xpose.msra.mxu0 0.0
    %71 = vmatprep.subr.mxu0 0.0
    %72 = vmatpush1.xpose.msra.mxu0 0.0
    %73 = vmatprep.subr.mxu0 0.0
    %74 = vmatpush1.xpose.msra.mxu0 0.0
    %75 = vmatprep.subr.mxu0 0.0
    %76 = vmatpush1.xpose.msra.mxu0 0.0
    %77 = vmatprep.subr.mxu0 0.0
    %78 = vmatpush1.xpose.msra.mxu0 0.0
    %79 = vmatprep.subr.mxu0 0.0
    %80 = vmatpush1.xpose.msra.mxu0 0.0
    %81 = vmatprep.subr.mxu0 0.0
    %82 = vmatpush1.xpose.msra.mxu0 0.0
    %83 = vmatprep.subr.mxu0 0.0
    %84 = vmatpush1.xpose.msra.mxu0 0.0
    %85 = vmatprep.subr.mxu0 0.0
    %86 = vmatpush1.xpose.msra.mxu0 0.0
    %87 = vmatprep.subr.mxu0 0.0
    %88 = vmatpush1.xpose.msra.mxu0 0.0
    %89 = vmatprep.subr.mxu0 0.0
    %90 = vmatpush1.xpose.msra.mxu0 0.0
    %91 = vmatprep.subr.mxu0 0.0
    %92 = vmatpush1.xpose.msra.mxu0 0.0
    %93 = vmatprep.subr.mxu0 0.0
    %94 = vmatpush1.xpose.msra.mxu0 0.0
    %95 = vmatprep.subr.mxu0 0.0
    %96 = vmatpush1.xpose.msra.mxu0 0.0
    %97 = vmatprep.subr.mxu0 0.0
    %98 = vmatpush1.xpose.msra.mxu0 0.0
    %99 = vmatprep.subr.mxu0 0.0
    %100 = vmatpush1.xpose.msra.mxu0 0.0
    %101 = vmatprep.subr.mxu0 0.0
    %102 = vmatpush1.xpose.msra.mxu0 0.0
    %103 = vmatprep.mubr.f32.mxu0 0.0
    %104 = vmatmul.mubr.f32.gmra.mrb[0].mxu0 %v34
    %v105 = vpop.f32.mrb[0].mxu0
    %v106 = vadd.f32 %v31, %v105
    %v107 = vpop.f32.mrb[0].mxu0
    %108 = vdwg.mxu0
    %v109 = vmul.f32 %v106, 1.442695
    %v110 = vpow.pop %v109
    %v111 = vadd.f32 %v110, 1.0
    %v112 = vrcp.pop %v111
    %v113 = vmul.f32 1.0, %v112
    %vm114 = vcmask 57344
    %115 = vst.msk [vmem:[#allocation6] sm:$0x1] %vm114, %v113
    // Predicated region
    $region18: #{model_logit_forward.1} parent=1 // pred_check
      _
    $region19: #{model_logit_forward.1} parent=1 // pred_check_branch
      %117 = sbr.rel (0) target = $region21
    $region20: #{model_logit_forward.1} parent=1 // pred_region
      %s119 = ssub.s32 16, 16
      %120 = vsyncadd [#allocation5], %s119
      %s122 = sshll.u32 [#allocation6], 4
      %s123 = int_to_ptr.vmem [resolvable:$true] %s122
      %125 = dma.vmem_to_hbm [thread:$0]  %s123, 16, %s3, [#allocation5]
    $region21: #{model_logit_forward.1} parent=1 // pred_fallthru
      _
    // Predicated region
    $region22: #{model_logit_forward.1} parent=1 // pred_check
      _
    $region23: #{model_logit_forward.1} parent=1 // pred_check_branch
      %127 = sbr.rel (0) target = $region25
    $region24: #{model_logit_forward.1} parent=1 // pred_region
      %128 = dma.done [#allocation5], 16
    $region25: #{model_logit_forward.1} parent=1 // pred_fallthru
      _
    %129 = vsyncpa [#allocation4], 1
    %130 = vsyncpa [#allocation5], 1

</llo_original>
